<compile_context>
chip_gen: v6e
topology: v6e:2x2x1
jax: 0.10.0
libtpu: 0.0.40
codegen_flags: <defaults>
</compile_context>

<pallas_src>
import functools

import jax
import jax.numpy as jnp
from jax.experimental import pallas as pl
from jax.experimental.pallas import tpu as pltpu


def _round_up(x, m):
    return (x + m - 1) // m * m


def _choose_tm(T, tm):
    """Row tile: MXU-friendly, keeps the grid deep enough to pipeline."""
    tm = min(tm, T)
    if tm >= 256:
        tm = (tm // 256) * 256                       # 256-wide MXU rows
        while tm > 256 and pl.cdiv(T, tm) < 4:       # >=4 steps (v7x 2 TCs)
            tm -= 256
    else:
        tm = _round_up(tm, 8)                        # (8,128) sublane rule
        if tm > T:
            tm = T                                   # full-extent block
    return tm


def bert_output_kernel(x_ref, res_ref, w_ref, p_ref, o_ref, *, eps,
                       compute_dtype):
    # MXU matmul with f32 accumulation; the activation cast to the compute
    # dtype happens here on the VPU and hides under the matmul.
    h = jnp.dot(x_ref[...].astype(compute_dtype), w_ref[...],
                preferred_element_type=jnp.float32)
    p = p_ref[...]                              # (3, H) f32: bias, gamma, beta
    h = h + p[0:1, :]                           # dense bias
    # TODO(synk): dropout omitted (inference / identity).
    h = h + res_ref[...].astype(jnp.float32)    # residual add

    # LayerNorm over the hidden dim (BertLayerNorm, eps=1e-12), f32 math:
    #   u = mean(x); s = mean((x-u)^2); (x-u)*rsqrt(s+eps)*gamma + beta
    u = jnp.mean(h, axis=-1, keepdims=True)
    c = h - u
    s = jnp.mean(c * c, axis=-1, keepdims=True)
    h_hat = c * jax.lax.rsqrt(s + eps)
    o_ref[...] = (p[1:2, :] * h_hat + p[2:3, :]).astype(o_ref.dtype)


def bert_output(hidden_states, input_tensor, weight, bias, gamma, beta,
                *, eps=1e-12, tm=512, compute_dtype=jnp.bfloat16,
                out_dtype=None):
    """hidden_states: [T, I], input_tensor: [T, H], weight: [I, H] (pre-T)."""
    T, I = hidden_states.shape
    H = input_tensor.shape[-1]
    out_dtype = input_tensor.dtype if out_dtype is None else out_dtype

    tm = _choose_tm(T, tm)
    grid_rows = pl.cdiv(T, tm)

    # One-time parameter prep (in a real model this is done at load time, not
    # per call): weight in the MXU compute dtype; LN params packed as (3, H).
    w = weight if weight.dtype == compute_dtype else weight.astype(compute_dtype)
    params = jnp.stack([bias, gamma, beta]).astype(jnp.float32)

    # VMEM budget from the actual working set: double-buffered activation /
    # residual / output tiles + single-buffered weight & params, 1.5x
    # headroom, capped at 56 MiB (below v7x's 64 MiB physical VMEM).
    x_b = jnp.dtype(hidden_states.dtype).itemsize
    res_b = jnp.dtype(input_tensor.dtype).itemsize
    out_b = jnp.dtype(out_dtype).itemsize
    w_b = jnp.dtype(compute_dtype).itemsize
    needed = (2 * tm * I * x_b          # hidden_states tile (double-buffered)
              + 2 * tm * H * res_b      # residual tile
              + 2 * tm * H * out_b      # output tile
              + I * H * w_b             # resident weight (single-buffered)
              + 3 * H * 4               # packed bias / gamma / beta
              + 4 * tm * H * 4)         # f32 intermediates / slack
    vmem_limit = int(min(56 * 2**20, max(32 * 2**20, int(1.5 * needed))))

    kernel = functools.partial(bert_output_kernel, eps=eps,
                               compute_dtype=compute_dtype)

    def call(single_buffer_consts):
        const_kw = ({"pipeline_mode": pl.Buffered(1)}
                    if single_buffer_consts else {})
        return pl.pallas_call(
            kernel,
            out_shape=jax.ShapeDtypeStruct((T, H), out_dtype),
            grid_spec=pltpu.PrefetchScalarGridSpec(
                num_scalar_prefetch=0,
                grid=(grid_rows,),
                in_specs=[
                    pl.BlockSpec((tm, I), lambda i: (i, 0)),   # activations
                    pl.BlockSpec((tm, H), lambda i: (i, 0)),   # residual
                    pl.BlockSpec((I, H), lambda i: (0, 0), **const_kw),  # W
                    pl.BlockSpec((3, H), lambda i: (0, 0), **const_kw),  # b/g/beta
                ],
                out_specs=pl.BlockSpec((tm, H), lambda i: (i, 0)),
            ),
            compiler_params=pltpu.CompilerParams(
                dimension_semantics=("parallel",),
                vmem_limit_bytes=vmem_limit),
        )(hidden_states, input_tensor, w, params)

    try:
        return call(True)
    except Exception:
        # Fallback for jax builds where pipeline_mode=pl.Buffered(1) is not
        # accepted on a top-level pallas_call BlockSpec: default buffering.
        return call(False)


def bert_output_ref(hidden_states, input_tensor, weight, bias, gamma, beta,
                    eps=1e-12):
    h = jnp.dot(hidden_states, weight, precision=jax.lax.Precision.HIGHEST)
    h = h + bias
    h = h + input_tensor
    u = jnp.mean(h, axis=-1, keepdims=True)
    s = jnp.mean((h - u) ** 2, axis=-1, keepdims=True)
    h = (h - u) / jnp.sqrt(s + eps)
    return gamma * h + beta


if __name__ == "__main__":
    # Small config: batch=2, seq=8, hidden=32, intermediate=128.
    batch, seq = 2, 8
    hidden_size, intermediate_size = 32, 128
    T = batch * seq

    key = jax.random.PRNGKey(0)
    k1, k2, k3, k4 = jax.random.split(key, 4)

    hidden_states = jax.random.normal(k1, (T, intermediate_size), jnp.float32)
    input_tensor = jax.random.normal(k2, (T, hidden_size), jnp.float32)

    # Linear weight pre-transposed to [I, H]; LN gamma/beta perturbed so the
    # affine part is exercised.
    weight = jax.random.normal(k3, (intermediate_size, hidden_size),
                               jnp.float32) * 0.02
    bias = jax.random.normal(k4, (hidden_size,), jnp.float32) * 0.01
    gamma = jnp.ones((hidden_size,), jnp.float32) + 0.1 * jnp.arange(
        hidden_size, dtype=jnp.float32) / hidden_size
    beta = 0.05 * jnp.arange(hidden_size, dtype=jnp.float32) / hidden_size

    ref = bert_output_ref(hidden_states, input_tensor, weight, bias, gamma,
                          beta)

    # 1) f32 compute path: validates the kernel math (tolerance covers MXU
    #    f32 pass differences vs. the XLA reference matmul).
    out_f32 = jax.block_until_ready(
        bert_output(hidden_states, input_tensor, weight, bias, gamma, beta,
                    compute_dtype=jnp.float32))
    assert out_f32.shape == (T, hidden_size)
    assert jnp.allclose(out_f32, ref, atol=2e-3, rtol=2e-3), \
        float(jnp.max(jnp.abs(out_f32 - ref)))

    # 2) default bf16 MXU path (weight pre-cast once, as a real model would).
    w_bf16 = weight.astype(jnp.bfloat16)
    out_bf16 = jax.block_until_ready(
        bert_output(hidden_states, input_tensor, w_bf16, bias, gamma, beta))
    assert out_bf16.shape == (T, hidden_size)
    assert jnp.allclose(out_bf16, ref, atol=2e-2, rtol=2e-2), \
        float(jnp.max(jnp.abs(out_bf16 - ref)))

    # 3) ragged token count, single full-extent block (T=15).
    T2 = 3 * 5
    hs2 = jax.random.normal(k1, (T2, intermediate_size), jnp.float32)
    res2 = jax.random.normal(k2, (T2, hidden_size), jnp.float32)
    out2 = jax.block_until_ready(
        bert_output(hs2, res2, w_bf16, bias, gamma, beta))
    ref2 = bert_output_ref(hs2, res2, weight, bias, gamma, beta)
    assert out2.shape == (T2, hidden_size)
    assert jnp.allclose(out2, ref2, atol=2e-2, rtol=2e-2), \
        float(jnp.max(jnp.abs(out2 - ref2)))

    # 4) T not a multiple of tm with several grid steps (ragged last block,
    #    exercises the no-pad / masked-write path).
    T3 = 40
    hs3 = jax.random.normal(k1, (T3, intermediate_size), jnp.float32)
    res3 = jax.random.normal(k2, (T3, hidden_size), jnp.float32)
    out3 = jax.block_until_ready(
        bert_output(hs3, res3, w_bf16, bias, gamma, beta, tm=16))
    ref3 = bert_output_ref(hs3, res3, weight, bias, gamma, beta)
    assert out3.shape == (T3, hidden_size)
    assert jnp.allclose(out3, ref3, atol=2e-2, rtol=2e-2), \
        float(jnp.max(jnp.abs(out3 - ref3)))

    print("KERNEL_OK")
</pallas_src>

<mosaic_0001>
module attributes {stable_mosaic.version = 11 : i64} {
  func.func @bert_output_kernel(%arg0: i32, %arg1: memref<16x128xf32, #tpu.memory_space<vmem>>, %arg2: memref<16x32xf32, #tpu.memory_space<vmem>>, %arg3: memref<128x32xf32, #tpu.memory_space<vmem>>, %arg4: memref<3x32xf32, #tpu.memory_space<vmem>>, %arg5: memref<16x32xf32, #tpu.memory_space<vmem>>) attributes {dimension_semantics = [#tpu.dimension_semantics<parallel>], iteration_bounds = array<i64: 1>, scalar_prefetch = 0 : i64, scratch_operands = 0 : i64, tpu.core_type = #tpu.core_type<tc>, window_params = [{transform_indices = @transform_0, window_bounds = array<i64: 16, 128>}, {transform_indices = @transform_1, window_bounds = array<i64: 16, 32>}, {pipeline_mode = #tpu.pipeline_mode<synchronous>, transform_indices = @transform_2, window_bounds = array<i64: 128, 32>}, {pipeline_mode = #tpu.pipeline_mode<synchronous>, transform_indices = @transform_3, window_bounds = array<i64: 3, 32>}, {transform_indices = @transform_4, window_bounds = array<i64: 16, 32>}]} {
    %c0 = arith.constant 0 : index
    %c0_0 = arith.constant 0 : index
    %0 = vector.load %arg1[%c0, %c0_0] : memref<16x128xf32, #tpu.memory_space<vmem>>, vector<16x128xf32>
    %c0_1 = arith.constant 0 : index
    %c0_2 = arith.constant 0 : index
    %1 = vector.load %arg3[%c0_1, %c0_2] : memref<128x32xf32, #tpu.memory_space<vmem>>, vector<128x32xf32>
    %cst = arith.constant dense<0.000000e+00> : vector<16x32xf32>
    %2 = tpu.matmul %0, %1, %cst {dimension_numbers = #tpu.dot_dimension_numbers<[1], [0], [0], [1], [0, 0, 1, 1], [], []>} : vector<16x128xf32>, vector<128x32xf32>, vector<16x32xf32> -> vector<16x32xf32>
    %c0_3 = arith.constant 0 : index
    %c0_4 = arith.constant 0 : index
    %3 = vector.load %arg4[%c0_3, %c0_4] : memref<3x32xf32, #tpu.memory_space<vmem>>, vector<3x32xf32>
    %4 = vector.extract_strided_slice %3 {offsets = [0, 0], sizes = [1, 32], strides = [1, 1]} : vector<3x32xf32> to vector<1x32xf32>
    %5 = vector.broadcast %4 : vector<1x32xf32> to vector<16x32xf32>
    %6 = arith.addf %2, %5 : vector<16x32xf32>
    %c0_5 = arith.constant 0 : index
    %c0_6 = arith.constant 0 : index
    %7 = vector.load %arg2[%c0_5, %c0_6] : memref<16x32xf32, #tpu.memory_space<vmem>>, vector<16x32xf32>
    %8 = arith.addf %6, %7 : vector<16x32xf32>
    %cst_7 = arith.constant dense<0.000000e+00> : vector<16xf32>
    %9 = vector.multi_reduction <add>, %8, %cst_7 [1] : vector<16x32xf32> to vector<16xf32>
    %10 = vector.shape_cast %9 : vector<16xf32> to vector<16x1xf32>
    %cst_8 = arith.constant 3.200000e+01 : f32
    %11 = vector.broadcast %cst_8 : f32 to vector<16x1xf32>
    %12 = arith.divf %10, %11 : vector<16x1xf32>
    %13 = vector.broadcast %12 : vector<16x1xf32> to vector<16x32xf32>
    %14 = arith.subf %8, %13 : vector<16x32xf32>
    %15 = arith.mulf %14, %14 : vector<16x32xf32>
    %cst_9 = arith.constant dense<0.000000e+00> : vector<16xf32>
    %16 = vector.multi_reduction <add>, %15, %cst_9 [1] : vector<16x32xf32> to vector<16xf32>
    %17 = vector.shape_cast %16 : vector<16xf32> to vector<16x1xf32>
    %cst_10 = arith.constant 3.200000e+01 : f32
    %18 = vector.broadcast %cst_10 : f32 to vector<16x1xf32>
    %19 = arith.divf %17, %18 : vector<16x1xf32>
    %cst_11 = arith.constant 9.99999996E-13 : f32
    %20 = vector.broadcast %cst_11 : f32 to vector<16x1xf32>
    %21 = arith.addf %19, %20 : vector<16x1xf32>
    %22 = math.rsqrt %21 : vector<16x1xf32>
    %23 = vector.broadcast %22 : vector<16x1xf32> to vector<16x32xf32>
    %24 = arith.mulf %14, %23 : vector<16x32xf32>
    %25 = vector.extract_strided_slice %3 {offsets = [1, 0], sizes = [1, 32], strides = [1, 1]} : vector<3x32xf32> to vector<1x32xf32>
    %26 = vector.broadcast %25 : vector<1x32xf32> to vector<16x32xf32>
    %27 = arith.mulf %26, %24 : vector<16x32xf32>
    %28 = vector.extract_strided_slice %3 {offsets = [2, 0], sizes = [1, 32], strides = [1, 1]} : vector<3x32xf32> to vector<1x32xf32>
    %29 = vector.broadcast %28 : vector<1x32xf32> to vector<16x32xf32>
    %30 = arith.addf %27, %29 : vector<16x32xf32>
    %c0_12 = arith.constant 0 : index
    %c0_13 = arith.constant 0 : index
    %31 = vector.load %arg5[%c0_12, %c0_13] : memref<16x32xf32, #tpu.memory_space<vmem>>, vector<16x32xf32>
    tpu.vector_store %arg5[%c0_12, %c0_13], %30 {strides = array<i32>} : memref<16x32xf32, #tpu.memory_space<vmem>>, vector<16x32xf32>,
    return
  }
  func.func @transform_0(%arg0: i32) -> (i32, i32) {
    %c0_i32 = arith.constant 0 : i32
    %c0_i32_0 = arith.constant 0 : i32
    return %arg0, %c0_i32 : i32, i32
  }
  func.func @transform_1(%arg0: i32) -> (i32, i32) {
    %c0_i32 = arith.constant 0 : i32
    %c0_i32_0 = arith.constant 0 : i32
    return %arg0, %c0_i32 : i32, i32
  }
  func.func @transform_2(%arg0: i32) -> (i32, i32) {
    %c0_i32 = arith.constant 0 : i32
    %c0_i32_0 = arith.constant 0 : i32
    %c0_i32_1 = arith.constant 0 : i32
    return %c0_i32, %c0_i32_0 : i32, i32
  }
  func.func @transform_3(%arg0: i32) -> (i32, i32) {
    %c0_i32 = arith.constant 0 : i32
    %c0_i32_0 = arith.constant 0 : i32
    %c0_i32_1 = arith.constant 0 : i32
    return %c0_i32, %c0_i32_0 : i32, i32
  }
  func.func @transform_4(%arg0: i32) -> (i32, i32) {
    %c0_i32 = arith.constant 0 : i32
    %c0_i32_0 = arith.constant 0 : i32
    return %arg0, %c0_i32 : i32, i32
  }
}

module attributes {stable_mosaic.version = 11 : i64} {
  func.func @bert_output_kernel(%arg0: i32, %arg1: memref<16x128xf32, #tpu.memory_space<vmem>>, %arg2: memref<16x32xf32, #tpu.memory_space<vmem>>, %arg3: memref<128x32xf32, #tpu.memory_space<vmem>>, %arg4: memref<3x32xf32, #tpu.memory_space<vmem>>, %arg5: memref<16x32xf32, #tpu.memory_space<vmem>>) attributes {dimension_semantics = [#tpu.dimension_semantics<parallel>], iteration_bounds = array<i64: 1>, scalar_prefetch = 0 : i64, scratch_operands = 0 : i64, tpu.core_type = #tpu.core_type<tc>, window_params = [{transform_indices = @transform_0, window_bounds = array<i64: 16, 128>}, {transform_indices = @transform_1, window_bounds = array<i64: 16, 32>}, {pipeline_mode = #tpu.pipeline_mode<synchronous>, transform_indices = @transform_2, window_bounds = array<i64: 128, 32>}, {pipeline_mode = #tpu.pipeline_mode<synchronous>, transform_indices = @transform_3, window_bounds = array<i64: 3, 32>}, {transform_indices = @transform_4, window_bounds = array<i64: 16, 32>}]} {
    %c0 = arith.constant 0 : index
    %c0_0 = arith.constant 0 : index
    %0 = vector.load %arg1[%c0, %c0_0] : memref<16x128xf32, #tpu.memory_space<vmem>>, vector<16x128xf32>
    %c0_1 = arith.constant 0 : index
    %c0_2 = arith.constant 0 : index
    %1 = vector.load %arg3[%c0_1, %c0_2] : memref<128x32xf32, #tpu.memory_space<vmem>>, vector<128x32xf32>
    %cst = arith.constant dense<0.000000e+00> : vector<16x32xf32>
    %2 = tpu.matmul %0, %1, %cst {dimension_numbers = #tpu.dot_dimension_numbers<[1], [0], [0], [1], [0, 0, 1, 1], [], []>} : vector<16x128xf32>, vector<128x32xf32>, vector<16x32xf32> -> vector<16x32xf32>
    %c0_3 = arith.constant 0 : index
    %c0_4 = arith.constant 0 : index
    %3 = vector.load %arg4[%c0_3, %c0_4] : memref<3x32xf32, #tpu.memory_space<vmem>>, vector<3x32xf32>
    %4 = vector.extract_strided_slice %3 {offsets = [0, 0], sizes = [1, 32], strides = [1, 1]} : vector<3x32xf32> to vector<1x32xf32>
    %5 = vector.broadcast %4 : vector<1x32xf32> to vector<16x32xf32>
    %6 = arith.addf %2, %5 : vector<16x32xf32>
    %c0_5 = arith.constant 0 : index
    %c0_6 = arith.constant 0 : index
    %7 = vector.load %arg2[%c0_5, %c0_6] : memref<16x32xf32, #tpu.memory_space<vmem>>, vector<16x32xf32>
    %8 = arith.addf %6, %7 : vector<16x32xf32>
    %cst_7 = arith.constant dense<0.000000e+00> : vector<16xf32>
    %9 = vector.multi_reduction <add>, %8, %cst_7 [1] : vector<16x32xf32> to vector<16xf32>
    %10 = vector.shape_cast %9 : vector<16xf32> to vector<16x1xf32>
    %cst_8 = arith.constant 3.200000e+01 : f32
    %11 = vector.broadcast %cst_8 : f32 to vector<16x1xf32>
    %12 = arith.divf %10, %11 : vector<16x1xf32>
    %13 = vector.broadcast %12 : vector<16x1xf32> to vector<16x32xf32>
    %14 = arith.subf %8, %13 : vector<16x32xf32>
    %15 = arith.mulf %14, %14 : vector<16x32xf32>
    %cst_9 = arith.constant dense<0.000000e+00> : vector<16xf32>
    %16 = vector.multi_reduction <add>, %15, %cst_9 [1] : vector<16x32xf32> to vector<16xf32>
    %17 = vector.shape_cast %16 : vector<16xf32> to vector<16x1xf32>
    %cst_10 = arith.constant 3.200000e+01 : f32
    %18 = vector.broadcast %cst_10 : f32 to vector<16x1xf32>
    %19 = arith.divf %17, %18 : vector<16x1xf32>
    %cst_11 = arith.constant 9.99999996E-13 : f32
    %20 = vector.broadcast %cst_11 : f32 to vector<16x1xf32>
    %21 = arith.addf %19, %20 : vector<16x1xf32>
    %22 = math.rsqrt %21 : vector<16x1xf32>
    %23 = vector.broadcast %22 : vector<16x1xf32> to vector<16x32xf32>
    %24 = arith.mulf %14, %23 : vector<16x32xf32>
    %25 = vector.extract_strided_slice %3 {offsets = [1, 0], sizes = [1, 32], strides = [1, 1]} : vector<3x32xf32> to vector<1x32xf32>
    %26 = vector.broadcast %25 : vector<1x32xf32> to vector<16x32xf32>
    %27 = arith.mulf %26, %24 : vector<16x32xf32>
    %28 = vector.extract_strided_slice %3 {offsets = [2, 0], sizes = [1, 32], strides = [1, 1]} : vector<3x32xf32> to vector<1x32xf32>
    %29 = vector.broadcast %28 : vector<1x32xf32> to vector<16x32xf32>
    %30 = arith.addf %27, %29 : vector<16x32xf32>
    %c0_12 = arith.constant 0 : index
    %c0_13 = arith.constant 0 : index
    %31 = vector.load %arg5[%c0_12, %c0_13] : memref<16x32xf32, #tpu.memory_space<vmem>>, vector<16x32xf32>
    tpu.vector_store %arg5[%c0_12, %c0_13], %30 {strides = array<i32>} : memref<16x32xf32, #tpu.memory_space<vmem>>, vector<16x32xf32>,
    return
  }
  func.func @transform_0(%arg0: i32) -> (i32, i32) {
    %c0_i32 = arith.constant 0 : i32
    %c0_i32_0 = arith.constant 0 : i32
    return %arg0, %c0_i32 : i32, i32
  }
  func.func @transform_1(%arg0: i32) -> (i32, i32) {
    %c0_i32 = arith.constant 0 : i32
    %c0_i32_0 = arith.constant 0 : i32
    return %arg0, %c0_i32 : i32, i32
  }
  func.func @transform_2(%arg0: i32) -> (i32, i32) {
    %c0_i32 = arith.constant 0 : i32
    %c0_i32_0 = arith.constant 0 : i32
    %c0_i32_1 = arith.constant 0 : i32
    return %c0_i32, %c0_i32_0 : i32, i32
  }
  func.func @transform_3(%arg0: i32) -> (i32, i32) {
    %c0_i32 = arith.constant 0 : i32
    %c0_i32_0 = arith.constant 0 : i32
    %c0_i32_1 = arith.constant 0 : i32
    return %c0_i32, %c0_i32_0 : i32, i32
  }
  func.func @transform_4(%arg0: i32) -> (i32, i32) {
    %c0_i32 = arith.constant 0 : i32
    %c0_i32_0 = arith.constant 0 : i32
    return %arg0, %c0_i32 : i32, i32
  }
}

</mosaic_0001>

<llo_original>
// kernel: tpu_custom_call.1
$region0: #{tpu_custom_call.1}
  #allocation0 [shape = 'u32[]', space=smem, size = 0x4, offset = 0x4, fixed_abs, tag = 'smem constant byte address 0x4 - core index']
  #allocation1 [shape = 'u32[144,128]{1,0:T(1,128)}', space=vmem, size = 0x12000, scoped, tag = 'internal scratch']
  %s0 = inlined_call_operand.vmem [shape: f32[16,128], index: 0, kind: input, shape index: {}]
  %s1 = inlined_call_operand.vmem [shape: f32[16,32], index: 1, kind: input, shape index: {}]
  %s2 = inlined_call_operand.vmem [shape: f32[128,32], index: 2, kind: input, shape index: {}]
  %s3 = inlined_call_operand.vmem [shape: f32[3,32], index: 3, kind: input, shape index: {}]
  %s4 = inlined_call_operand.hbm [shape: f32[16,32], index: 4, kind: output, shape index: {}]
  %s5 = sld [smem:[#allocation0]]
  $region26: #{tpu_custom_call.1} parent=0
    _
  %s7 = ssub.s32 1, %s5
  %s8 = scalar_select 0, %s7, %s5
  $region1: #{tpu_custom_call.1} parent=0
    #allocation2 [shape = 'u8[8192]{0}', space=vmem, size = 0x2000, scoped, tag = 'output window, operand 0, single buffered']
    #allocation3 [shape = 's32[1]{0}', space=sflag, size = 0x4, scoped, tag = 'scoped memory for tpu_custom_call.1']
    %9 = vsyncpa [#allocation3], 0
    // Predicated region
    $region2: #{tpu_custom_call.1} parent=1 // pred_check
      _
    $region3: #{tpu_custom_call.1} parent=1 // pred_check_branch
      %11 = sbr.rel (0) target = $region5
    $region4: #{tpu_custom_call.1} parent=1 // pred_region
      _
    $region5: #{tpu_custom_call.1} parent=1 // pred_fallthru
      _
    // Predicated region
    $region6: #{tpu_custom_call.1} parent=1 // pred_check
      _
    $region7: #{tpu_custom_call.1} parent=1 // pred_check_branch
      %13 = sbr.rel (0) target = $region9
    $region8: #{tpu_custom_call.1} parent=1 // pred_region
      _
    $region9: #{tpu_custom_call.1} parent=1 // pred_fallthru
      _
    // Predicated region
    $region10: #{tpu_custom_call.1} parent=1 // pred_check
      _
    $region11: #{tpu_custom_call.1} parent=1 // pred_check_branch
      %15 = sbr.rel (0) target = $region13
    $region12: #{tpu_custom_call.1} parent=1 // pred_region
      _
    $region13: #{tpu_custom_call.1} parent=1 // pred_fallthru
      _
    // Predicated region
    $region14: #{tpu_custom_call.1} parent=1 // pred_check
      _
    $region15: #{tpu_custom_call.1} parent=1 // pred_check_branch
      %17 = sbr.rel (0) target = $region17
    $region16: #{tpu_custom_call.1} parent=1 // pred_region
      _
    $region17: #{tpu_custom_call.1} parent=1 // pred_fallthru
      _
    %v18 = vld [vmem:[%s0] sm:$0xff]
    %v19 = vld [vmem:[%s0 + $0x8] sm:$0xff]
    %v20 = vld [vmem:[%s2] sm:$0xff]
    %v21 = vld [vmem:[%s2 + $0x8] sm:$0xff]
    %v22 = vld [vmem:[%s2 + $0x10] sm:$0xff]
    %v23 = vld [vmem:[%s2 + $0x18] sm:$0xff]
    %v24 = vld [vmem:[%s2 + $0x20] sm:$0xff]
    %v25 = vld [vmem:[%s2 + $0x28] sm:$0xff]
    %v26 = vld [vmem:[%s2 + $0x30] sm:$0xff]
    %v27 = vld [vmem:[%s2 + $0x38] sm:$0xff]
    %v28 = vld [vmem:[%s2 + $0x40] sm:$0xff]
    %v29 = vld [vmem:[%s2 + $0x48] sm:$0xff]
    %v30 = vld [vmem:[%s2 + $0x50] sm:$0xff]
    %v31 = vld [vmem:[%s2 + $0x58] sm:$0xff]
    %v32 = vld [vmem:[%s2 + $0x60] sm:$0xff]
    %v33 = vld [vmem:[%s2 + $0x68] sm:$0xff]
    %v34 = vld [vmem:[%s2 + $0x70] sm:$0xff]
    %v35 = vld [vmem:[%s2 + $0x78] sm:$0xff]
    %v36 = vld [vmem:[%s3] sm:$0x7]
    %v37 = vlaneseq
    %v38 = vshrl.u32 %v37, 7
    %v39 = vsub.s32 0, %v38
    %v40 = vrot.slane %v36, %v39
    %41 = vmatprep.subr.mxu0 0.0
    %42 = vmatpush1.msra.mxu0 %v35
    %43 = vmatprep.subr.mxu0 0.0
    %44 = vmatpush1.msra.mxu0 %v34
    %45 = vmatprep.subr.mxu0 0.0
    %46 = vmatpush1.msra.mxu0 %v33
    %47 = vmatprep.subr.mxu0 0.0
    %48 = vmatpush1.msra.mxu0 %v32
    %49 = vmatprep.subr.mxu0 0.0
    %50 = vmatpush1.msra.mxu0 %v31
    %51 = vmatprep.subr.mxu0 0.0
    %52 = vmatpush1.msra.mxu0 %v30
    %53 = vmatprep.subr.mxu0 0.0
    %54 = vmatpush1.msra.mxu0 %v29
    %55 = vmatprep.subr.mxu0 0.0
    %56 = vmatpush1.msra.mxu0 %v28
    %57 = vmatprep.subr.mxu0 0.0
    %58 = vmatpush1.msra.mxu0 %v27
    %59 = vmatprep.subr.mxu0 0.0
    %60 = vmatpush1.msra.mxu0 %v26
    %61 = vmatprep.subr.mxu0 0.0
    %62 = vmatpush1.msra.mxu0 %v25
    %63 = vmatprep.subr.mxu0 0.0
    %64 = vmatpush1.msra.mxu0 %v24
    %65 = vmatprep.subr.mxu0 0.0
    %66 = vmatpush1.msra.mxu0 %v23
    %67 = vmatprep.subr.mxu0 0.0
    %68 = vmatpush1.msra.mxu0 %v22
    %69 = vmatprep.subr.mxu0 0.0
    %70 = vmatpush1.msra.mxu0 %v21
    %71 = vmatprep.subr.mxu0 0.0
    %72 = vmatpush1.msra.mxu0 %v20
    %73 = vmatprep.subr.mxu0 0.0
    %74 = vmatpush2.msra.mxu0 0.0
    %75 = vmatprep.subr.mxu0 0.0
    %76 = vmatpush2.msra.mxu0 0.0
    %77 = vmatprep.subr.mxu0 0.0
    %78 = vmatpush2.msra.mxu0 0.0
    %79 = vmatprep.subr.mxu0 0.0
    %80 = vmatpush2.msra.mxu0 0.0
    %81 = vmatprep.subr.mxu0 0.0
    %82 = vmatpush2.msra.mxu0 0.0
    %83 = vmatprep.subr.mxu0 0.0
    %84 = vmatpush2.msra.mxu0 0.0
    %85 = vmatprep.subr.mxu0 0.0
    %86 = vmatpush2.msra.mxu0 0.0
    %87 = vmatprep.subr.mxu0 0.0
    %88 = vmatpush2.msra.mxu0 0.0
    %89 = vmatprep.subr.mxu0 0.0
    %90 = vmatpush2.msra.mxu0 0.0
    %91 = vmatprep.subr.mxu0 0.0
    %92 = vmatpush2.msra.mxu0 0.0
    %93 = vmatprep.subr.mxu0 0.0
    %94 = vmatpush2.msra.mxu0 0.0
    %95 = vmatprep.subr.mxu0 0.0
    %96 = vmatpush2.msra.mxu0 0.0
    %97 = vmatprep.subr.mxu0 0.0
    %98 = vmatpush2.msra.mxu0 0.0
    %99 = vmatprep.subr.mxu0 0.0
    %100 = vmatpush2.msra.mxu0 0.0
    %101 = vmatprep.subr.mxu0 0.0
    %102 = vmatpush2.msra.mxu0 0.0
    %103 = vmatprep.subr.mxu0 0.0
    %104 = vmatpush2.msra.mxu0 0.0
    %105 = vmatprep.mubr.f32.mxu0 0.0
    %106 = vmatmul.mubr.f32.gmra.mxu0 %v18
    %v107 = vpop.f32.mrf.mxu0
    %v108 = vadd.f32 %v40, %v107
    %v109 = vpop.f32.mrf.mxu0
    %110 = vmatprep.mubr.f32.mxu0 0.0
    %111 = vmatmul.mubr.f32.gmra.mxu0 %v19
    %v112 = vpop.f32.mrf.mxu0
    %v113 = vadd.f32 %v40, %v112
    %v114 = vpop.f32.mrf.mxu0
    %115 = vdwg.mxu0
    %v116 = vld [vmem:[%s1] sm:$0xff]
    %v117 = vld [vmem:[%s1 + $0x8] sm:$0xff]
    %v118 = vadd.f32 %v108, %v116
    %v119 = vadd.f32 %v113, %v117
    %vm120 = vcmask 261120
    %v121 = vsel %vm120, %v118, 0.0
    %122 = vadd.xlane.f32.xlu0 %v121
    %v123 = vpop.xlane.xlu0 %122
    %v124 = vsel %vm120, %v119, 0.0
    %125 = vadd.xlane.f32.xlu0 %v124
    %v126 = vpop.xlane.xlu0 %125
    %v127 = vrcp.pop 32.0
    %v128 = vmul.f32 %v123, %v127
    %v129 = vmul.f32 %v126, %v127
    %v130 = vsub.f32 %v118, %v128
    %v131 = vsub.f32 %v119, %v129
    %v132 = vmul.f32 %v130, %v130
    %v133 = vmul.f32 %v131, %v131
    %v134 = vsel %vm120, %v132, 0.0
    %135 = vadd.xlane.f32.xlu0 %v134
    %v136 = vpop.xlane.xlu0 %135
    %v137 = vsel %vm120, %v133, 0.0
    %138 = vadd.xlane.f32.xlu0 %v137
    %v139 = vpop.xlane.xlu0 %138
    %v140 = vmul.f32 %v136, %v127
    %v141 = vmul.f32 %v139, %v127
    %v142 = vadd.f32 %v140, 1e-12
    %v143 = vadd.f32 %v141, 1e-12
    %v144 = vrsqrt.pop %v142
    %v145 = vrsqrt.pop %v143
    %v146 = vmul.f32 %v130, %v144
    %v147 = vmul.f32 %v131, %v145
    %v148 = vlaneseq
    %v149 = vshrl.u32 %v148, 7
    %v150 = vsub.s32 1, %v149
    %v151 = vrot.slane %v36, %v150
    %v152 = vmul.f32 %v151, %v146
    %v153 = vmul.f32 %v151, %v147
    %v154 = vlaneseq
    %v155 = vshrl.u32 %v154, 7
    %v156 = vsub.s32 2, %v155
    %v157 = vrot.slane %v36, %v156
    %v158 = vadd.f32 %v152, %v157
    %v159 = vadd.f32 %v153, %v157
    %160 = vst.msk [vmem:[#allocation2] sm:$0xff] %vm120, %v158
    %161 = vst.msk [vmem:[#allocation2 + $0x8] sm:$0xff] %vm120, %v159
    // Predicated region
    $region18: #{tpu_custom_call.1} parent=1 // pred_check
      _
    $region19: #{tpu_custom_call.1} parent=1 // pred_check_branch
      %163 = sbr.rel (0) target = $region21
    $region20: #{tpu_custom_call.1} parent=1 // pred_region
      %s165 = ssub.s32 256, 256
      %166 = vsyncadd [#allocation3], %s165
      %s167 = sshll.u32 [#allocation2], 4
      %s168 = int_to_ptr.vmem [resolvable:$true] %s167
      %173 = dma.vmem_to_hbm [thread:$0]  %s168, 256, %s4, [#allocation3], 128, 128, 8
    $region21: #{tpu_custom_call.1} parent=1 // pred_fallthru
      _
    // Predicated region
    $region22: #{tpu_custom_call.1} parent=1 // pred_check
      _
    $region23: #{tpu_custom_call.1} parent=1 // pred_check_branch
      %175 = sbr.rel (0) target = $region25
    $region24: #{tpu_custom_call.1} parent=1 // pred_region
      %176 = dma.done [#allocation3], 256
    $region25: #{tpu_custom_call.1} parent=1 // pred_fallthru
      _
    %177 = vsyncpa [#allocation3], 1

// kernel: tpu_custom_call.1
$region0: #{tpu_custom_call.1}
  #allocation0 [shape = 'u32[]', space=smem, size = 0x4, offset = 0x4, fixed_abs, tag = 'smem constant byte address 0x4 - core index']
  #allocation1 [shape = 'u32[144,128]{1,0:T(1,128)}', space=vmem, size = 0x12000, scoped, tag = 'internal scratch']
  %s0 = inlined_call_operand.vmem [shape: f32[16,128], index: 0, kind: input, shape index: {}]
  %s1 = inlined_call_operand.vmem [shape: f32[16,32], index: 1, kind: input, shape index: {}]
  %s2 = inlined_call_operand.vmem [shape: f32[128,32], index: 2, kind: input, shape index: {}]
  %s3 = inlined_call_operand.vmem [shape: f32[3,32], index: 3, kind: input, shape index: {}]
  %s4 = inlined_call_operand.hbm [shape: f32[16,32], index: 4, kind: output, shape index: {}]
  %s5 = sld [smem:[#allocation0]]
  $region26: #{tpu_custom_call.1} parent=0
    _
  %s7 = ssub.s32 1, %s5
  %s8 = scalar_select 0, %s7, %s5
  $region1: #{tpu_custom_call.1} parent=0
    #allocation2 [shape = 'u8[8192]{0}', space=vmem, size = 0x2000, scoped, tag = 'output window, operand 0, single buffered']
    #allocation3 [shape = 's32[1]{0}', space=sflag, size = 0x4, scoped, tag = 'scoped memory for tpu_custom_call.1']
    %9 = vsyncpa [#allocation3], 0
    // Predicated region
    $region2: #{tpu_custom_call.1} parent=1 // pred_check
      _
    $region3: #{tpu_custom_call.1} parent=1 // pred_check_branch
      %11 = sbr.rel (0) target = $region5
    $region4: #{tpu_custom_call.1} parent=1 // pred_region
      _
    $region5: #{tpu_custom_call.1} parent=1 // pred_fallthru
      _
    // Predicated region
    $region6: #{tpu_custom_call.1} parent=1 // pred_check
      _
    $region7: #{tpu_custom_call.1} parent=1 // pred_check_branch
      %13 = sbr.rel (0) target = $region9
    $region8: #{tpu_custom_call.1} parent=1 // pred_region
      _
    $region9: #{tpu_custom_call.1} parent=1 // pred_fallthru
      _
    // Predicated region
    $region10: #{tpu_custom_call.1} parent=1 // pred_check
      _
    $region11: #{tpu_custom_call.1} parent=1 // pred_check_branch
      %15 = sbr.rel (0) target = $region13
    $region12: #{tpu_custom_call.1} parent=1 // pred_region
      _
    $region13: #{tpu_custom_call.1} parent=1 // pred_fallthru
      _
    // Predicated region
    $region14: #{tpu_custom_call.1} parent=1 // pred_check
      _
    $region15: #{tpu_custom_call.1} parent=1 // pred_check_branch
      %17 = sbr.rel (0) target = $region17
    $region16: #{tpu_custom_call.1} parent=1 // pred_region
      _
    $region17: #{tpu_custom_call.1} parent=1 // pred_fallthru
      _
    %v18 = vld [vmem:[%s0] sm:$0xff]
    %v19 = vld [vmem:[%s0 + $0x8] sm:$0xff]
    %v20 = vld [vmem:[%s2] sm:$0xff]
    %v21 = vld [vmem:[%s2 + $0x8] sm:$0xff]
    %v22 = vld [vmem:[%s2 + $0x10] sm:$0xff]
    %v23 = vld [vmem:[%s2 + $0x18] sm:$0xff]
    %v24 = vld [vmem:[%s2 + $0x20] sm:$0xff]
    %v25 = vld [vmem:[%s2 + $0x28] sm:$0xff]
    %v26 = vld [vmem:[%s2 + $0x30] sm:$0xff]
    %v27 = vld [vmem:[%s2 + $0x38] sm:$0xff]
    %v28 = vld [vmem:[%s2 + $0x40] sm:$0xff]
    %v29 = vld [vmem:[%s2 + $0x48] sm:$0xff]
    %v30 = vld [vmem:[%s2 + $0x50] sm:$0xff]
    %v31 = vld [vmem:[%s2 + $0x58] sm:$0xff]
    %v32 = vld [vmem:[%s2 + $0x60] sm:$0xff]
    %v33 = vld [vmem:[%s2 + $0x68] sm:$0xff]
    %v34 = vld [vmem:[%s2 + $0x70] sm:$0xff]
    %v35 = vld [vmem:[%s2 + $0x78] sm:$0xff]
    %v36 = vld [vmem:[%s3] sm:$0x7]
    %v37 = vlaneseq
    %v38 = vshrl.u32 %v37, 7
    %v39 = vsub.s32 0, %v38
    %v40 = vrot.slane %v36, %v39
    %41 = vmatprep.subr.mxu0 0.0
    %42 = vmatpush1.msra.mxu0 %v35
    %43 = vmatprep.subr.mxu0 0.0
    %44 = vmatpush1.msra.mxu0 %v34
    %45 = vmatprep.subr.mxu0 0.0
    %46 = vmatpush1.msra.mxu0 %v33
    %47 = vmatprep.subr.mxu0 0.0
    %48 = vmatpush1.msra.mxu0 %v32
    %49 = vmatprep.subr.mxu0 0.0
    %50 = vmatpush1.msra.mxu0 %v31
    %51 = vmatprep.subr.mxu0 0.0
    %52 = vmatpush1.msra.mxu0 %v30
    %53 = vmatprep.subr.mxu0 0.0
    %54 = vmatpush1.msra.mxu0 %v29
    %55 = vmatprep.subr.mxu0 0.0
    %56 = vmatpush1.msra.mxu0 %v28
    %57 = vmatprep.subr.mxu0 0.0
    %58 = vmatpush1.msra.mxu0 %v27
    %59 = vmatprep.subr.mxu0 0.0
    %60 = vmatpush1.msra.mxu0 %v26
    %61 = vmatprep.subr.mxu0 0.0
    %62 = vmatpush1.msra.mxu0 %v25
    %63 = vmatprep.subr.mxu0 0.0
    %64 = vmatpush1.msra.mxu0 %v24
    %65 = vmatprep.subr.mxu0 0.0
    %66 = vmatpush1.msra.mxu0 %v23
    %67 = vmatprep.subr.mxu0 0.0
    %68 = vmatpush1.msra.mxu0 %v22
    %69 = vmatprep.subr.mxu0 0.0
    %70 = vmatpush1.msra.mxu0 %v21
    %71 = vmatprep.subr.mxu0 0.0
    %72 = vmatpush1.msra.mxu0 %v20
    %73 = vmatprep.subr.mxu0 0.0
    %74 = vmatpush2.msra.mxu0 0.0
    %75 = vmatprep.subr.mxu0 0.0
    %76 = vmatpush2.msra.mxu0 0.0
    %77 = vmatprep.subr.mxu0 0.0
    %78 = vmatpush2.msra.mxu0 0.0
    %79 = vmatprep.subr.mxu0 0.0
    %80 = vmatpush2.msra.mxu0 0.0
    %81 = vmatprep.subr.mxu0 0.0
    %82 = vmatpush2.msra.mxu0 0.0
    %83 = vmatprep.subr.mxu0 0.0
    %84 = vmatpush2.msra.mxu0 0.0
    %85 = vmatprep.subr.mxu0 0.0
    %86 = vmatpush2.msra.mxu0 0.0
    %87 = vmatprep.subr.mxu0 0.0
    %88 = vmatpush2.msra.mxu0 0.0
    %89 = vmatprep.subr.mxu0 0.0
    %90 = vmatpush2.msra.mxu0 0.0
    %91 = vmatprep.subr.mxu0 0.0
    %92 = vmatpush2.msra.mxu0 0.0
    %93 = vmatprep.subr.mxu0 0.0
    %94 = vmatpush2.msra.mxu0 0.0
    %95 = vmatprep.subr.mxu0 0.0
    %96 = vmatpush2.msra.mxu0 0.0
    %97 = vmatprep.subr.mxu0 0.0
    %98 = vmatpush2.msra.mxu0 0.0
    %99 = vmatprep.subr.mxu0 0.0
    %100 = vmatpush2.msra.mxu0 0.0
    %101 = vmatprep.subr.mxu0 0.0
    %102 = vmatpush2.msra.mxu0 0.0
    %103 = vmatprep.subr.mxu0 0.0
    %104 = vmatpush2.msra.mxu0 0.0
    %105 = vmatprep.mubr.f32.mxu0 0.0
    %106 = vmatmul.mubr.f32.gmra.mxu0 %v18
    %v107 = vpop.f32.mrf.mxu0
    %v108 = vadd.f32 %v40, %v107
    %v109 = vpop.f32.mrf.mxu0
    %110 = vmatprep.mubr.f32.mxu0 0.0
    %111 = vmatmul.mubr.f32.gmra.mxu0 %v19
    %v112 = vpop.f32.mrf.mxu0
    %v113 = vadd.f32 %v40, %v112
    %v114 = vpop.f32.mrf.mxu0
    %115 = vdwg.mxu0
    %v116 = vld [vmem:[%s1] sm:$0xff]
    %v117 = vld [vmem:[%s1 + $0x8] sm:$0xff]
    %v118 = vadd.f32 %v108, %v116
    %v119 = vadd.f32 %v113, %v117
    %vm120 = vcmask 261120
    %v121 = vsel %vm120, %v118, 0.0
    %122 = vadd.xlane.f32.xlu0 %v121
    %v123 = vpop.xlane.xlu0 %122
    %v124 = vsel %vm120, %v119, 0.0
    %125 = vadd.xlane.f32.xlu0 %v124
    %v126 = vpop.xlane.xlu0 %125
    %v127 = vrcp.pop 32.0
    %v128 = vmul.f32 %v123, %v127
    %v129 = vmul.f32 %v126, %v127
    %v130 = vsub.f32 %v118, %v128
    %v131 = vsub.f32 %v119, %v129
    %v132 = vmul.f32 %v130, %v130
    %v133 = vmul.f32 %v131, %v131
    %v134 = vsel %vm120, %v132, 0.0
    %135 = vadd.xlane.f32.xlu0 %v134
    %v136 = vpop.xlane.xlu0 %135
    %v137 = vsel %vm120, %v133, 0.0
    %138 = vadd.xlane.f32.xlu0 %v137
    %v139 = vpop.xlane.xlu0 %138
    %v140 = vmul.f32 %v136, %v127
    %v141 = vmul.f32 %v139, %v127
    %v142 = vadd.f32 %v140, 1e-12
    %v143 = vadd.f32 %v141, 1e-12
    %v144 = vrsqrt.pop %v142
    %v145 = vrsqrt.pop %v143
    %v146 = vmul.f32 %v130, %v144
    %v147 = vmul.f32 %v131, %v145
    %v148 = vlaneseq
    %v149 = vshrl.u32 %v148, 7
    %v150 = vsub.s32 1, %v149
    %v151 = vrot.slane %v36, %v150
    %v152 = vmul.f32 %v151, %v146
    %v153 = vmul.f32 %v151, %v147
    %v154 = vlaneseq
    %v155 = vshrl.u32 %v154, 7
    %v156 = vsub.s32 2, %v155
    %v157 = vrot.slane %v36, %v156
    %v158 = vadd.f32 %v152, %v157
    %v159 = vadd.f32 %v153, %v157
    %160 = vst.msk [vmem:[#allocation2] sm:$0xff] %vm120, %v158
    %161 = vst.msk [vmem:[#allocation2 + $0x8] sm:$0xff] %vm120, %v159
    // Predicated region
    $region18: #{tpu_custom_call.1} parent=1 // pred_check
      _
    $region19: #{tpu_custom_call.1} parent=1 // pred_check_branch
      %163 = sbr.rel (0) target = $region21
    $region20: #{tpu_custom_call.1} parent=1 // pred_region
      %s165 = ssub.s32 256, 256
      %166 = vsyncadd [#allocation3], %s165
      %s167 = sshll.u32 [#allocation2], 4
      %s168 = int_to_ptr.vmem [resolvable:$true] %s167
      %173 = dma.vmem_to_hbm [thread:$0]  %s168, 256, %s4, [#allocation3], 128, 128, 8
    $region21: #{tpu_custom_call.1} parent=1 // pred_fallthru
      _
    // Predicated region
    $region22: #{tpu_custom_call.1} parent=1 // pred_check
      _
    $region23: #{tpu_custom_call.1} parent=1 // pred_check_branch
      %175 = sbr.rel (0) target = $region25
    $region24: #{tpu_custom_call.1} parent=1 // pred_region
      %176 = dma.done [#allocation3], 256
    $region25: #{tpu_custom_call.1} parent=1 // pred_fallthru
      _
    %177 = vsyncpa [#allocation3], 1

</llo_original>
